<compile_context>
chip_gen: v7x
topology: tpu7x:2x2x1
jax: 0.10.0
libtpu: 0.0.40
codegen_flags: <defaults>
</compile_context>

<pallas_src>
import jax
import jax.numpy as jnp
from jax.experimental import pallas as pl
from jax.experimental.pallas import tpu as pltpu


def image_context_kernel(x_ref, w1_ref, b1_ref, w2_ref, b2_ref, o_ref):
    """One out_dim tile: out[:, j*TN:(j+1)*TN] = SiLU(x@w1+b1) @ w2_tile + b2_tile."""
    # First linear (tiny, B rows) — native weight dtype on the MXU, f32 accum.
    x = x_ref[...].astype(w1_ref.dtype)
    h = jnp.dot(x, w1_ref[...], preferred_element_type=jnp.float32)
    h = h + b1_ref[...].astype(jnp.float32)
    # SiLU in f32 (EUP sigmoid — separate bundle slot, effectively free here).
    h = h * jax.nn.sigmoid(h)
    # Second linear over the streamed, contiguous (W, TN) weight tile.
    h = h.astype(w2_ref.dtype)
    out = jnp.dot(h, w2_ref[0], preferred_element_type=jnp.float32)
    out = out + b2_ref[0].astype(jnp.float32)
    o_ref[...] = out.astype(o_ref.dtype)


def _round_up(a, m):
    return (a + m - 1) // m * m


def _default_tn():
    """Generation-aware default output tile width."""
    try:
        kind = jax.devices()[0].device_kind.lower()
    except Exception:
        kind = ""
    return 2048 if "v7" in kind else 1024


def prepare_params(w1, b1, w2, b2, *, tn=None):
    """One-time (load-time) weight preprocessing.

    Tiles w2 / b2 into contiguous (n_tiles, W, tn) / (n_tiles, 1, tn) blocks so
    every grid step is a single large linear HBM transfer, and pads the ragged
    tail here ONCE instead of on every forward call.
    """
    W, out_dim = w2.shape
    itemsize = jnp.dtype(w2.dtype).itemsize

    if tn is None:
        tn = _default_tn()
    tn = min(tn, _round_up(out_dim, 128))
    tn = _round_up(tn, 128)
    tn = min(tn, 2048)  # vreg-pressure guard (f32 accumulator width)
    # Keep the double-buffered w2 stream under ~24 MiB so the full working set
    # fits v7x's 64 MiB VMEM (vmem_limit_bytes is raised to match in forward).
    while tn > 128 and 2 * W * tn * itemsize > 24 * 1024 * 1024:
        tn = max(128, _round_up(tn // 2, 128))

    n_tiles = pl.cdiv(out_dim, tn)
    padded = n_tiles * tn
    if padded != out_dim:
        w2 = jnp.pad(w2, ((0, 0), (0, padded - out_dim)))
        b2 = jnp.pad(b2, ((0, 0), (0, padded - out_dim)))

    w2_tiles = w2.reshape(W, n_tiles, tn).transpose(1, 0, 2)     # (n_tiles, W, tn), contiguous
    b2_tiles = b2.reshape(1, n_tiles, tn).transpose(1, 0, 2)     # (n_tiles, 1, tn)
    b1 = b1.reshape(1, -1)

    return {
        "w1": w1,
        "b1": b1,
        "w2_tiles": w2_tiles,
        "b2_tiles": b2_tiles,
        "tn": tn,
        "out_dim": out_dim,
    }


def image_context_forward(x, params, token_num):
    """x: (B, context_dim) -> (B, token_num, context_dim)."""
    B, C = x.shape
    w1, b1 = params["w1"], params["b1"]
    w2_tiles, b2_tiles = params["w2_tiles"], params["b2_tiles"]
    tn, out_dim = params["tn"], params["out_dim"]
    n_tiles, W, _ = w2_tiles.shape
    padded = n_tiles * tn

    x_isz = jnp.dtype(x.dtype).itemsize
    w_isz = jnp.dtype(w1.dtype).itemsize

    # VMEM working set: default double-buffered resident inputs + streamed
    # w2/b2 tiles + double-buffered output tile.  Cap at 60 MiB (< v7x 64 MiB).
    vmem_needed = (
        2 * (B * C * x_isz + C * W * w_isz + W * w_isz)      # x, w1, b1
        + 2 * (W * tn * w_isz + tn * w_isz)                  # w2 / b2 stream
        + 2 * B * tn * x_isz                                 # output tiles
    )
    vmem_limit = int(min(max(2 * vmem_needed, 32 * 1024 * 1024), 60 * 1024 * 1024))

    cost = pl.CostEstimate(
        flops=2 * B * C * W + 2 * B * W * padded,
        transcendentals=B * W,
        bytes_accessed=(
            B * C * x_isz
            + C * W * w_isz + W * w_isz
            + n_tiles * (W * tn + tn) * w_isz
            + B * padded * x_isz
        ),
    )

    out_flat = pl.pallas_call(
        image_context_kernel,
        out_shape=jax.ShapeDtypeStruct((B, padded), x.dtype),
        grid_spec=pltpu.PrefetchScalarGridSpec(
            num_scalar_prefetch=0,
            grid=(n_tiles,),
            in_specs=[
                # x / w1 / b1: constant block index -> DMA'd once, stay resident.
                pl.BlockSpec((B, C), lambda j: (0, 0)),
                pl.BlockSpec((C, W), lambda j: (0, 0)),
                pl.BlockSpec((1, W), lambda j: (0, 0)),
                # w2 / b2: contiguous per-tile blocks streamed + double-buffered.
                pl.BlockSpec((1, W, tn), lambda j: (j, 0, 0)),
                pl.BlockSpec((1, 1, tn), lambda j: (j, 0, 0)),
            ],
            out_specs=pl.BlockSpec((B, tn), lambda j: (0, j)),
        ),
        compiler_params=pltpu.CompilerParams(
            dimension_semantics=("parallel",),
            vmem_limit_bytes=vmem_limit,
        ),
        cost_estimate=cost,
    )(x, w1, b1, w2_tiles, b2_tiles)

    out_flat = out_flat[:, :out_dim]
    return out_flat.reshape(B, token_num, out_dim // token_num)


def init_params(key, context_dim, width, token_num, dtype=jnp.bfloat16):
    k1, k2, k3, k4 = jax.random.split(key, 4)
    # Deterministic synthetic init (matches nn.Linear shapes, stored as (in, out)).
    w1 = (jax.random.normal(k1, (context_dim, width), jnp.float32)
          * (1.0 / context_dim ** 0.5)).astype(dtype)
    b1 = (jax.random.normal(k2, (1, width), jnp.float32) * 0.01).astype(dtype)
    w2 = (jax.random.normal(k3, (width, token_num * context_dim), jnp.float32)
          * (1.0 / width ** 0.5)).astype(dtype)
    b2 = (jax.random.normal(k4, (1, token_num * context_dim), jnp.float32)
          * 0.01).astype(dtype)
    return w1, b1, w2, b2


def _reference(x, w1, b1, w2, b2, token_num):
    """Pure-JAX reference mirroring the kernel's cast sequence (eval-mode DropPath == id)."""
    B, C = x.shape
    xh = x.astype(w1.dtype).astype(jnp.float32)
    h = xh @ w1.astype(jnp.float32) + b1.reshape(1, -1).astype(jnp.float32)
    h = h * jax.nn.sigmoid(h)
    h = h.astype(w2.dtype).astype(jnp.float32)
    out = h @ w2.astype(jnp.float32) + b2.reshape(1, -1).astype(jnp.float32)
    return out.astype(x.dtype).reshape(B, token_num, -1)


if __name__ == "__main__":
    key = jax.random.PRNGKey(0)

    # Check 1: small shapes consistent with the module; tn=128 forces a
    # multi-step (grid=(2,)) streamed-w2 pipeline over the pre-tiled weights.
    B, context_dim, width, token_num = 8, 128, 256, 2
    kx, kp, kx2, kp2 = jax.random.split(key, 4)
    x = jax.random.normal(kx, (B, context_dim), jnp.float32)
    w1, b1, w2, b2 = init_params(kp, context_dim, width, token_num)
    params = prepare_params(w1, b1, w2, b2, tn=128)

    out = image_context_forward(x, params, token_num)
    jax.block_until_ready(out)
    out_ref = _reference(x, w1, b1, w2, b2, token_num)
    assert out.shape == (B, token_num, context_dim)
    assert jnp.allclose(out, out_ref, atol=1e-2, rtol=1e-2)

    # Check 2: out_dim not a multiple of 128 exercises the one-time (load-time)
    # pad in prepare_params plus the wrapper tail slice; default (chip-aware) tn.
    context_dim2, token_num2 = 96, 1
    x2 = jax.random.normal(kx2, (B, context_dim2), jnp.float32)
    w1b, b1b, w2b, b2b = init_params(kp2, context_dim2, width, token_num2)
    params2 = prepare_params(w1b, b1b, w2b, b2b)
    out2 = image_context_forward(x2, params2, token_num2)
    jax.block_until_ready(out2)
    out2_ref = _reference(x2, w1b, b1b, w2b, b2b, token_num2)
    assert out2.shape == (B, token_num2, context_dim2)
    assert jnp.allclose(out2, out2_ref, atol=1e-2, rtol=1e-2)

    # TODO(synk): DropPath stochastic batch-dropping (training mode) is not
    # implemented; inference semantics (identity) are reproduced exactly.
    print("KERNEL_OK")
</pallas_src>

<mosaic_0001>
module attributes {stable_mosaic.version = 11 : i64} {
  func.func @image_context_kernel(%arg0: i32, %arg1: memref<8x128xf32, #tpu.memory_space<vmem>>, %arg2: memref<128x256xbf16, #tpu.memory_space<vmem>>, %arg3: memref<1x256xbf16, #tpu.memory_space<vmem>>, %arg4: memref<1x256x128xbf16, #tpu.memory_space<vmem>>, %arg5: memref<1x1x128xbf16, #tpu.memory_space<vmem>>, %arg6: memref<8x128xf32, #tpu.memory_space<vmem>>) attributes {dimension_semantics = [#tpu.dimension_semantics<parallel>], iteration_bounds = array<i64: 2>, scalar_prefetch = 0 : i64, scratch_operands = 0 : i64, tpu.core_type = #tpu.core_type<tc>, window_params = [{pipeline_mode = #tpu.pipeline_mode<synchronous>, transform_indices = @transform_0, window_bounds = array<i64: 8, 128>}, {pipeline_mode = #tpu.pipeline_mode<synchronous>, transform_indices = @transform_1, window_bounds = array<i64: 128, 256>}, {pipeline_mode = #tpu.pipeline_mode<synchronous>, transform_indices = @transform_2, window_bounds = array<i64: 1, 256>}, {transform_indices = @transform_3, window_bounds = array<i64: 1, 256, 128>}, {transform_indices = @transform_4, window_bounds = array<i64: 1, 1, 128>}, {transform_indices = @transform_5, window_bounds = array<i64: 8, 128>}]} {
    %c0 = arith.constant 0 : index
    %c0_0 = arith.constant 0 : index
    %0 = vector.load %arg1[%c0, %c0_0] : memref<8x128xf32, #tpu.memory_space<vmem>>, vector<8x128xf32>
    %1 = arith.truncf %0 : vector<8x128xf32> to vector<8x128xbf16>
    %c0_1 = arith.constant 0 : index
    %c0_2 = arith.constant 0 : index
    %2 = vector.load %arg2[%c0_1, %c0_2] : memref<128x256xbf16, #tpu.memory_space<vmem>>, vector<128x256xbf16>
    %cst = arith.constant dense<0.000000e+00> : vector<8x256xf32>
    %3 = tpu.matmul %1, %2, %cst {dimension_numbers = #tpu.dot_dimension_numbers<[1], [0], [0], [1], [0, 0, 1, 1], [], []>} : vector<8x128xbf16>, vector<128x256xbf16>, vector<8x256xf32> -> vector<8x256xf32>
    %c0_3 = arith.constant 0 : index
    %c0_4 = arith.constant 0 : index
    %4 = vector.load %arg3[%c0_3, %c0_4] : memref<1x256xbf16, #tpu.memory_space<vmem>>, vector<1x256xbf16>
    %5 = arith.extf %4 : vector<1x256xbf16> to vector<1x256xf32>
    %6 = vector.broadcast %5 : vector<1x256xf32> to vector<8x256xf32>
    %7 = arith.addf %3, %6 : vector<8x256xf32>
    %8 = arith.negf %7 : vector<8x256xf32>
    %9 = math.exp %8 : vector<8x256xf32>
    %cst_5 = arith.constant 1.000000e+00 : f32
    %10 = vector.broadcast %cst_5 : f32 to vector<8x256xf32>
    %11 = arith.addf %10, %9 : vector<8x256xf32>
    %12 = arith.divf %10, %11 : vector<8x256xf32>
    %13 = arith.mulf %7, %12 : vector<8x256xf32>
    %14 = arith.truncf %13 : vector<8x256xf32> to vector<8x256xbf16>
    %c0_6 = arith.constant 0 : index
    %c0_7 = arith.constant 0 : index
    %c0_8 = arith.constant 0 : index
    %15 = vector.load %arg4[%c0_6, %c0_7, %c0_8] : memref<1x256x128xbf16, #tpu.memory_space<vmem>>, vector<1x256x128xbf16>
    %16 = vector.shape_cast %15 : vector<1x256x128xbf16> to vector<256x128xbf16>
    %cst_9 = arith.constant dense<0.000000e+00> : vector<8x128xf32>
    %17 = tpu.matmul %14, %16, %cst_9 {dimension_numbers = #tpu.dot_dimension_numbers<[1], [0], [0], [1], [0, 0, 1, 1], [], []>} : vector<8x256xbf16>, vector<256x128xbf16>, vector<8x128xf32> -> vector<8x128xf32>
    %c0_10 = arith.constant 0 : index
    %c0_11 = arith.constant 0 : index
    %c0_12 = arith.constant 0 : index
    %18 = vector.load %arg5[%c0_10, %c0_11, %c0_12] : memref<1x1x128xbf16, #tpu.memory_space<vmem>>, vector<1x1x128xbf16>
    %19 = vector.shape_cast %18 : vector<1x1x128xbf16> to vector<1x128xbf16>
    %20 = arith.extf %19 : vector<1x128xbf16> to vector<1x128xf32>
    %21 = vector.broadcast %20 : vector<1x128xf32> to vector<8x128xf32>
    %22 = arith.addf %17, %21 : vector<8x128xf32>
    %c0_13 = arith.constant 0 : index
    %c0_14 = arith.constant 0 : index
    %23 = vector.load %arg6[%c0_13, %c0_14] : memref<8x128xf32, #tpu.memory_space<vmem>>, vector<8x128xf32>
    tpu.vector_store %arg6[%c0_13, %c0_14], %22 {strides = array<i32>} : memref<8x128xf32, #tpu.memory_space<vmem>>, vector<8x128xf32>,
    return
  }
  func.func @transform_0(%arg0: i32) -> (i32, i32) {
    %c0_i32 = arith.constant 0 : i32
    %c0_i32_0 = arith.constant 0 : i32
    %c0_i32_1 = arith.constant 0 : i32
    return %c0_i32, %c0_i32_0 : i32, i32
  }
  func.func @transform_1(%arg0: i32) -> (i32, i32) {
    %c0_i32 = arith.constant 0 : i32
    %c0_i32_0 = arith.constant 0 : i32
    %c0_i32_1 = arith.constant 0 : i32
    return %c0_i32, %c0_i32_0 : i32, i32
  }
  func.func @transform_2(%arg0: i32) -> (i32, i32) {
    %c0_i32 = arith.constant 0 : i32
    %c0_i32_0 = arith.constant 0 : i32
    %c0_i32_1 = arith.constant 0 : i32
    return %c0_i32, %c0_i32_0 : i32, i32
  }
  func.func @transform_3(%arg0: i32) -> (i32, i32, i32) {
    %c0_i32 = arith.constant 0 : i32
    %c0_i32_0 = arith.constant 0 : i32
    %c0_i32_1 = arith.constant 0 : i32
    return %arg0, %c0_i32, %c0_i32_0 : i32, i32, i32
  }
  func.func @transform_4(%arg0: i32) -> (i32, i32, i32) {
    %c0_i32 = arith.constant 0 : i32
    %c0_i32_0 = arith.constant 0 : i32
    %c0_i32_1 = arith.constant 0 : i32
    return %arg0, %c0_i32, %c0_i32_0 : i32, i32, i32
  }
  func.func @transform_5(%arg0: i32) -> (i32, i32) {
    %c0_i32 = arith.constant 0 : i32
    %c0_i32_0 = arith.constant 0 : i32
    return %c0_i32, %arg0 : i32, i32
  }
}

</mosaic_0001>

<llo_original>
// kernel: tpu_custom_call.1
$region0: #{tpu_custom_call.1}
  #allocation0 [shape = 'u32[]', space=smem, size = 0x4, offset = 0x4, fixed_abs, tag = 'smem constant byte address 0x4 - core index']
  #allocation1 [shape = 'u32[144,128]{1,0:T(1,128)}', space=vmem, size = 0x12000, scoped, tag = 'internal scratch']
  %s0 = inlined_call_operand.hbm [shape: f32[8,128], index: 0, kind: input, shape index: {}]
  %s1 = inlined_call_operand.hbm [shape: bf16[128,256], index: 1, kind: input, shape index: {}]
  %s2 = inlined_call_operand.vmem [shape: bf16[1,256], index: 2, kind: input, shape index: {}]
  %s3 = inlined_call_operand.hbm [shape: bf16[2,256,128], index: 3, kind: input, shape index: {}]
  %s4 = inlined_call_operand.vmem [shape: bf16[2,1,128], index: 4, kind: input, shape index: {}]
  %s5 = inlined_call_operand.hbm [shape: f32[8,256], index: 5, kind: output, shape index: {}]
  %s6 = sld [smem:[#allocation0]]
  $region65: #{tpu_custom_call.1} parent=0
    _
  %s8 = ssub.s32 1, %s6
  %s9 = scalar_select 0, %s8, %s6
  $region1: #{tpu_custom_call.1} parent=0
    #allocation2 [shape = 'u8[4096]{0}', space=vmem, size = 0x1000, scoped, tag = 'input window, operand 0, single buffered']
    #allocation3 [shape = 's32[2]{0}', space=sflag, size = 0x8, scoped, tag = 'scoped memory for tpu_custom_call.1']
    #allocation4 [shape = 's32[2]{0}', space=sflag, size = 0x8, scoped, tag = 'scoped memory for tpu_custom_call.1']
    #allocation5 [shape = 'u8[65536]{0}', space=vmem, size = 0x10000, scoped, tag = 'input window, operand 1, single buffered']
    #allocation6 [shape = 's32[1]{0}', space=sflag, size = 0x4, scoped, tag = 'scoped memory for tpu_custom_call.1']
    #allocation7 [shape = 'u8[131072]{0}', space=vmem, size = 0x20000, scoped, tag = 'input window, operand 3']
    #allocation8 [shape = 'u8[8192]{0}', space=vmem, size = 0x2000, scoped, tag = 'output window, operand 0']
    %10 = vsyncpa [#allocation3], 0
    %11 = vsyncpa [#allocation6], 0
    %12 = vsyncpa [#allocation4], 0
    %s13 = scalar_lea.sflag [#allocation4], 1
    %14 = vsyncpa %s13, 0
    loop: start=0, step=1, limit=4
    $region2: #{tpu_custom_call.1} parent=1 // loop_pre_header
      _
    $region3: #{tpu_custom_call.1} parent=1 // loop_header
      %s16 = sphi 0, %s20
      %p17 = scmp.ge.s32.totalorder %s16, 4
      %s24 = sphi 0, %s24
      %s26 = sphi 0, %s24
      %s27 = sphi 0, %s26
      %s41 = sphi 0, %s27
      %s45 = sphi 0, %s45
      %s47 = sphi 0, %s45
      %s48 = sphi 0, %s47
      %s62 = sphi 0, %s48
      %s66 = sphi 0, %s66
      %s68 = sphi 0, %s66
      %s69 = sphi 0, %s68
      %s83 = sphi 0, %s69
      %s89 = sphi 0, %s91
      %s92 = sphi 0, %s89
      %s93 = sphi 0, %s92
      %s109 = sphi 0, %s93
      %s115 = sphi 0, %s117
      %s118 = sphi 0, %s115
      %s119 = sphi 0, %s118
      %s135 = sphi 0, %s119
      %s141 = sphi 0, %s143
      %s144 = sphi 0, %s141
      %s145 = sphi 0, %s144
      %s161 = sphi 0, %s145
    $region4: #{tpu_custom_call.1} parent=1 // loop_header_branch
      %19 = sbr.rel (%p17) target = $region8
    $region5: #{tpu_custom_call.1} parent=1 // loop_body
      %s21 = ssub.s32 %s16, 1
      %s22 = ssub.s32 %s16, 2
      %s23 = sadd.s32 %s16, 1
      %s25 = sadd.s32 %s24, 1
      %p28 = scmp.eq.s32.totalorder %s16, 1
      %p29 = scmp.ne.s32.totalorder %s24, %s26
      %p30 = scmp.eq.s32.totalorder %s16, 0
      %p31 = por %p29, %p30
      %p32 = scmp.ne.s32.totalorder %s24, %s26
      %p33 = scmp.eq.s32.totalorder %s21, 1
      %p34 = por %p32, %p33
      %p35 = scmp.ne.s32.totalorder %s26, %s27
      %p36 = scmp.eq.s32.totalorder %s21, 0
      %p37 = por %p35, %p36
      %p38 = scmp.ne.s32.totalorder %s26, %s27
      %p39 = scmp.eq.s32.totalorder %s22, 1
      %p40 = por %p38, %p39
      %p42 = scmp.ne.s32.totalorder %s27, %s41
      %p43 = scmp.eq.s32.totalorder %s22, 0
      %p44 = por %p42, %p43
      %s46 = sadd.s32 %s45, 1
      %p49 = scmp.eq.s32.totalorder %s16, 1
      %p50 = scmp.ne.s32.totalorder %s45, %s47
      %p51 = scmp.eq.s32.totalorder %s16, 0
      %p52 = por %p50, %p51
      %p53 = scmp.ne.s32.totalorder %s45, %s47
      %p54 = scmp.eq.s32.totalorder %s21, 1
      %p55 = por %p53, %p54
      %p56 = scmp.ne.s32.totalorder %s47, %s48
      %p57 = scmp.eq.s32.totalorder %s21, 0
      %p58 = por %p56, %p57
      %p59 = scmp.ne.s32.totalorder %s47, %s48
      %p60 = scmp.eq.s32.totalorder %s22, 1
      %p61 = por %p59, %p60
      %p63 = scmp.ne.s32.totalorder %s48, %s62
      %p64 = scmp.eq.s32.totalorder %s22, 0
      %p65 = por %p63, %p64
      %s67 = sadd.s32 %s66, 1
      %p70 = scmp.eq.s32.totalorder %s16, 1
      %p71 = scmp.ne.s32.totalorder %s66, %s68
      %p72 = scmp.eq.s32.totalorder %s16, 0
      %p73 = por %p71, %p72
      %p74 = scmp.ne.s32.totalorder %s66, %s68
      %p75 = scmp.eq.s32.totalorder %s21, 1
      %p76 = por %p74, %p75
      %p77 = scmp.ne.s32.totalorder %s68, %s69
      %p78 = scmp.eq.s32.totalorder %s21, 0
      %p79 = por %p77, %p78
      %p80 = scmp.ne.s32.totalorder %s68, %s69
      %p81 = scmp.eq.s32.totalorder %s22, 1
      %p82 = por %p80, %p81
      %p84 = scmp.ne.s32.totalorder %s69, %s83
      %p85 = scmp.eq.s32.totalorder %s22, 0
      %p86 = por %p84, %p85
      %s87 = ssub.s32 %s16, %s23
      %p88 = scmp.eq.s32.totalorder %s87, 0
      %s90 = sadd.s32 %s89, 1
      %s91 = scalar_select %p88, %s89, %s90
      %p94 = pneg %p88
      %p95 = scmp.eq.s32.totalorder %s16, 1
      %p96 = por %p94, %p95
      %p97 = scmp.ne.s32.totalorder %s89, %s92
      %p98 = scmp.eq.s32.totalorder %s16, 0
      %p99 = por %p97, %p98
      %p100 = scmp.ne.s32.totalorder %s89, %s92
      %p101 = scmp.eq.s32.totalorder %s21, 1
      %p102 = por %p100, %p101
      %p103 = scmp.ne.s32.totalorder %s92, %s93
      %p104 = scmp.eq.s32.totalorder %s21, 0
      %p105 = por %p103, %p104
      %p106 = scmp.ne.s32.totalorder %s92, %s93
      %p107 = scmp.eq.s32.totalorder %s22, 1
      %p108 = por %p106, %p107
      %p110 = scmp.ne.s32.totalorder %s93, %s109
      %p111 = scmp.eq.s32.totalorder %s22, 0
      %p112 = por %p110, %p111
      %s113 = ssub.s32 %s16, %s23
      %p114 = scmp.eq.s32.totalorder %s113, 0
      %s116 = sadd.s32 %s115, 1
      %s117 = scalar_select %p114, %s115, %s116
      %p120 = pneg %p114
      %p121 = scmp.eq.s32.totalorder %s16, 1
      %p122 = por %p120, %p121
      %p123 = scmp.ne.s32.totalorder %s115, %s118
      %p124 = scmp.eq.s32.totalorder %s16, 0
      %p125 = por %p123, %p124
      %p126 = scmp.ne.s32.totalorder %s115, %s118
      %p127 = scmp.eq.s32.totalorder %s21, 1
      %p128 = por %p126, %p127
      %p129 = scmp.ne.s32.totalorder %s118, %s119
      %p130 = scmp.eq.s32.totalorder %s21, 0
      %p131 = por %p129, %p130
      %p132 = scmp.ne.s32.totalorder %s118, %s119
      %p133 = scmp.eq.s32.totalorder %s22, 1
      %p134 = por %p132, %p133
      %p136 = scmp.ne.s32.totalorder %s119, %s135
      %p137 = scmp.eq.s32.totalorder %s22, 0
      %p138 = por %p136, %p137
      %s139 = ssub.s32 %s16, %s23
      %p140 = scmp.eq.s32.totalorder %s139, 0
      %s142 = sadd.s32 %s141, 1
      %s143 = scalar_select %p140, %s141, %s142
      %p146 = pneg %p140
      %p147 = scmp.eq.s32.totalorder %s16, 1
      %p148 = por %p146, %p147
      %p149 = scmp.ne.s32.totalorder %s141, %s144
      %p150 = scmp.eq.s32.totalorder %s16, 0
      %p151 = por %p149, %p150
      %p152 = scmp.ne.s32.totalorder %s141, %s144
      %p153 = scmp.eq.s32.totalorder %s21, 1
      %p154 = por %p152, %p153
      %p155 = scmp.ne.s32.totalorder %s144, %s145
      %p156 = scmp.eq.s32.totalorder %s21, 0
      %p157 = por %p155, %p156
      %p158 = scmp.ne.s32.totalorder %s144, %s145
      %p159 = scmp.eq.s32.totalorder %s22, 1
      %p160 = por %p158, %p159
      %p162 = scmp.ne.s32.totalorder %s145, %s161
      %p163 = scmp.eq.s32.totalorder %s22, 0
      %p164 = por %p162, %p163
      %p165 = scmp.le.s32.totalorder 1, %s16
      %p166 = scmp.lt.s32.totalorder %s16, 3
      %p167 = pnand %p165, %p166
      %p168 = pneg %p167
      // Predicated region
      $region9: #{tpu_custom_call.1} parent=5 // pred_check
        _
      $region10: #{tpu_custom_call.1} parent=5 // pred_check_branch
        %170 = sbr.rel (%p167) target = $region12
      $region11: #{tpu_custom_call.1} parent=5 // pred_region
        %s171 = ssub.s32 %s16, 1
        // Predicated region
        $region13: #{tpu_custom_call.1} parent=11 // pred_check
          %p172 = pneg %p37
        $region14: #{tpu_custom_call.1} parent=11 // pred_check_branch
          %174 = sbr.rel (%p172) target = $region16
        $region15: #{tpu_custom_call.1} parent=11 // pred_region
          %s176 = ssub.s32 128, 128
          %177 = vsyncadd [#allocation3], %s176
          %s179 = sshll.u32 [#allocation2], 4
          %s180 = int_to_ptr.vmem [resolvable:$true] %s179
          %182 = dma.hbm_to_vmem [thread:$0]  %s0, 128, %s180, [#allocation3]
        $region16: #{tpu_custom_call.1} parent=11 // pred_fallthru
          _
        // Predicated region
        $region17: #{tpu_custom_call.1} parent=11 // pred_check
          %p183 = pneg %p58
        $region18: #{tpu_custom_call.1} parent=11 // pred_check_branch
          %185 = sbr.rel (%p183) target = $region20
        $region19: #{tpu_custom_call.1} parent=11 // pred_region
          %s187 = ssub.s32 2048, 2048
          %188 = vsyncadd [#allocation6], %s187
          %s189 = sshll.u32 [#allocation5], 4
          %s190 = int_to_ptr.vmem [resolvable:$true] %s189
          %195 = dma.hbm_to_vmem [thread:$0]  %s1, 2048, %s190, [#allocation6], 128, 128, 8
        $region20: #{tpu_custom_call.1} parent=11 // pred_fallthru
          _
        // Predicated region
        $region21: #{tpu_custom_call.1} parent=11 // pred_check
          %p196 = pneg %p79
        $region22: #{tpu_custom_call.1} parent=11 // pred_check_branch
          %198 = sbr.rel (%p196) target = $region24
        $region23: #{tpu_custom_call.1} parent=11 // pred_region
          _
        $region24: #{tpu_custom_call.1} parent=11 // pred_fallthru
          _
      $region12: #{tpu_custom_call.1} parent=5 // pred_fallthru
        _
      %p199 = scmp.lt.s32.totalorder %s16, 2
      // Predicated region
      $region25: #{tpu_custom_call.1} parent=5 // pred_check
        %p200 = pneg %p199
      $region26: #{tpu_custom_call.1} parent=5 // pred_check_branch
        %202 = sbr.rel (%p200) target = $region28
      $region27: #{tpu_custom_call.1} parent=5 // pred_region
        // Predicated region
        $region29: #{tpu_custom_call.1} parent=27 // pred_check
          %p203 = pneg %p99
        $region30: #{tpu_custom_call.1} parent=27 // pred_check_branch
          %205 = sbr.rel (%p203) target = $region32
        $region31: #{tpu_custom_call.1} parent=27 // pred_region
          %s206 = sand.u32 %s16, 1
          %s207 = scalar_lea.sflag [#allocation3], %s206
          %s208 = sand.u32 %s89, 1
          %s209 = smul.addr %s208, 128
          %s210 = scalar_lea.vmem [#allocation7], %s209
          %s212 = ssub.s32 2048, 2048
          %213 = vsyncadd %s207, %s212
          %s214 = smul.addr %s16, 32
          %s215 = smul.addr %s214, 64
          %s216 = scalar_lea.hbm %s3, %s215
          %s217 = sshll.u32 %s210, 4
          %s218 = int_to_ptr.vmem [resolvable:$true] %s217
          %223 = dma.hbm_to_vmem [thread:$0]  %s216, 2048, %s218, %s207, 64, 64, 4
        $region32: #{tpu_custom_call.1} parent=27 // pred_fallthru
          _
        // Predicated region
        $region33: #{tpu_custom_call.1} parent=27 // pred_check
          %p224 = pneg %p125
        $region34: #{tpu_custom_call.1} parent=27 // pred_check_branch
          %226 = sbr.rel (%p224) target = $region36
        $region35: #{tpu_custom_call.1} parent=27 // pred_region
          %p227 = scmp.lt.s32.totalorder %s16, 1
          %s228 = scalar_select %p227, %s16, 1
          %s229 = scalar_lea.vmem %s4, %s228
        $region36: #{tpu_custom_call.1} parent=27 // pred_fallthru
          _
      $region28: #{tpu_custom_call.1} parent=5 // pred_fallthru
        _
      %p230 = scmp.le.s32.totalorder 1, %s16
      %p231 = scmp.lt.s32.totalorder %s16, 3
      %p232 = pnand %p230, %p231
      %p233 = pneg %p232
      // Predicated region
      $region37: #{tpu_custom_call.1} parent=5 // pred_check
        _
      $region38: #{tpu_custom_call.1} parent=5 // pred_check_branch
        %235 = sbr.rel (%p232) target = $region40
      $region39: #{tpu_custom_call.1} parent=5 // pred_region
        %s236 = ssub.s32 %s16, 1
        // Predicated region
        $region41: #{tpu_custom_call.1} parent=39 // pred_check
          %p237 = pneg %p37
        $region42: #{tpu_custom_call.1} parent=39 // pred_check_branch
          %239 = sbr.rel (%p237) target = $region44
        $region43: #{tpu_custom_call.1} parent=39 // pred_region
          %240 = dma.done [#allocation3], 128
        $region44: #{tpu_custom_call.1} parent=39 // pred_fallthru
          _
        // Predicated region
        $region45: #{tpu_custom_call.1} parent=39 // pred_check
          %p241 = pneg %p58
        $region46: #{tpu_custom_call.1} parent=39 // pred_check_branch
          %243 = sbr.rel (%p241) target = $region48
        $region47: #{tpu_custom_call.1} parent=39 // pred_region
          %244 = dma.done [#allocation6], 2048
        $region48: #{tpu_custom_call.1} parent=39 // pred_fallthru
          _
        %s245 = sand.u32 %s21, 1
        %s246 = scalar_lea.sflag [#allocation3], %s245
        %s247 = sand.u32 %s92, 1
        %s248 = smul.addr %s247, 128
        %s249 = scalar_lea.vmem [#allocation7], %s248
        // Predicated region
        $region49: #{tpu_custom_call.1} parent=39 // pred_check
          %p250 = pneg %p105
        $region50: #{tpu_custom_call.1} parent=39 // pred_check_branch
          %252 = sbr.rel (%p250) target = $region52
        $region51: #{tpu_custom_call.1} parent=39 // pred_region
          %253 = dma.done %s246, 2048
        $region52: #{tpu_custom_call.1} parent=39 // pred_fallthru
          _
        %p254 = pneg %p37
        %p255 = pneg %p34
        %p256 = pneg %p58
        %p257 = pneg %p55
        %p258 = pneg %p79
        %p259 = pneg %p76
        %s260 = sand.u32 %s21, 1
        %s261 = scalar_lea.sflag [#allocation3], %s260
        %s262 = sand.u32 %s92, 1
        %s263 = smul.addr %s262, 128
        %s264 = scalar_lea.vmem [#allocation7], %s263
        %p265 = pneg %p105
        %p266 = pneg %p102
        %p267 = scmp.lt.s32.totalorder %s21, 1
        %s268 = scalar_select %p267, %s21, 1
        %s269 = scalar_lea.vmem %s4, %s268
        %p270 = pneg %p131
        %p271 = pneg %p128
        %p272 = pneg %p157
        %p273 = pneg %p154
        %s274 = sand.u32 %s144, 1
        %s275 = scalar_lea.sflag [#allocation4], %s274
        %s276 = sand.u32 %s144, 1
        %s277 = smul.addr %s276, 8
        %s278 = scalar_lea.vmem [#allocation8], %s277
        %p279 = scmp.lt.s32.totalorder %s21, 1
        %s280 = scalar_select %p279, %s21, 1
        %s281 = scalar_lea.vmem %s4, %s280
        %v283 = vld [vmem:[#allocation2] sm:$0xff]
        %v284 = vpack.c.bf16 %v283, %v283
        %v285 = vld [vmem:[#allocation5] sm:$0xff]
        %v286 = vld [vmem:[#allocation5 + $0x8] sm:$0xff]
        %v287 = vld [vmem:[#allocation5 + $0x10] sm:$0xff]
        %v288 = vld [vmem:[#allocation5 + $0x18] sm:$0xff]
        %v289 = vld [vmem:[#allocation5 + $0x20] sm:$0xff]
        %v290 = vld [vmem:[#allocation5 + $0x28] sm:$0xff]
        %v291 = vld [vmem:[#allocation5 + $0x30] sm:$0xff]
        %v292 = vld [vmem:[#allocation5 + $0x38] sm:$0xff]
        %v293 = vld [vmem:[#allocation5 + $0x40] sm:$0xff]
        %v294 = vld [vmem:[#allocation5 + $0x48] sm:$0xff]
        %v295 = vld [vmem:[#allocation5 + $0x50] sm:$0xff]
        %v296 = vld [vmem:[#allocation5 + $0x58] sm:$0xff]
        %v297 = vld [vmem:[#allocation5 + $0x60] sm:$0xff]
        %v298 = vld [vmem:[#allocation5 + $0x68] sm:$0xff]
        %v299 = vld [vmem:[#allocation5 + $0x70] sm:$0xff]
        %v300 = vld [vmem:[#allocation5 + $0x78] sm:$0xff]
        %v301 = vld [vmem:[%s2] sm:$0x3]
        %v302 = vunpack.c.l.bf16 %v301
        %v304 = vlaneseq
        %v305 = vshrl.u32 %v304, 7
        %v306 = vsub.s32 0, %v305
        %v307 = vrot.slane %v302, %v306
        %v308 = vlaneseq
        %v309 = vshrl.u32 %v308, 7
        %v310 = vsub.s32 2, %v309
        %v311 = vrot.slane %v302, %v310
        %v314 = vlaneseq
        %v315 = vshrl.u32 %v314, 7
        %v316 = vsub.s32 0, %v315
        %v317 = vrot.slane %v307, %v316
        %v318 = vlaneseq
        %v319 = vshrl.u32 %v318, 7
        %v320 = vsub.s32 0, %v319
        %v321 = vrot.slane %v311, %v320
        %v338 = vunpack.c.l.b16 %v285
        %v339 = vunpack.c.h.b16 %v285
        %v340 = vunpack.c.l.b16 %v286
        %v341 = vunpack.c.h.b16 %v286
        %v342 = vunpack.c.l.b16 %v287
        %v343 = vunpack.c.h.b16 %v287
        %v344 = vunpack.c.l.b16 %v288
        %v345 = vunpack.c.h.b16 %v288
        %v346 = vunpack.c.l.b16 %v289
        %v347 = vunpack.c.h.b16 %v289
        %v348 = vunpack.c.l.b16 %v290
        %v349 = vunpack.c.h.b16 %v290
        %v350 = vunpack.c.l.b16 %v291
        %v351 = vunpack.c.h.b16 %v291
        %v352 = vunpack.c.l.b16 %v292
        %v353 = vunpack.c.h.b16 %v292
        %v354 = vunpack.c.l.b16 %v293
        %v355 = vunpack.c.h.b16 %v293
        %v356 = vunpack.c.l.b16 %v294
        %v357 = vunpack.c.h.b16 %v294
        %v358 = vunpack.c.l.b16 %v295
        %v359 = vunpack.c.h.b16 %v295
        %v360 = vunpack.c.l.b16 %v296
        %v361 = vunpack.c.h.b16 %v296
        %v362 = vunpack.c.l.b16 %v297
        %v363 = vunpack.c.h.b16 %v297
        %v364 = vunpack.c.l.b16 %v298
        %v365 = vunpack.c.h.b16 %v298
        %v366 = vunpack.c.l.b16 %v299
        %v367 = vunpack.c.h.b16 %v299
        %v368 = vunpack.c.l.b16 %v300
        %v369 = vunpack.c.h.b16 %v300
        %v370 = vpack.c.b16 %v340, %v338
        %v371 = vpack.c.b16 %v341, %v339
        %v372 = vpack.c.b16 %v344, %v342
        %v373 = vpack.c.b16 %v345, %v343
        %v374 = vpack.c.b16 %v348, %v346
        %v375 = vpack.c.b16 %v349, %v347
        %v376 = vpack.c.b16 %v352, %v350
        %v377 = vpack.c.b16 %v353, %v351
        %v378 = vpack.c.b16 %v356, %v354
        %v379 = vpack.c.b16 %v357, %v355
        %v380 = vpack.c.b16 %v360, %v358
        %v381 = vpack.c.b16 %v361, %v359
        %v382 = vpack.c.b16 %v364, %v362
        %v383 = vpack.c.b16 %v365, %v363
        %v384 = vpack.c.b16 %v368, %v366
        %v385 = vpack.c.b16 %v369, %v367
        %402 = vmatprep.subr.bf16.mxu0 %v371
        %403 = vmatpush1.bf16.msra.mxu0 %v370
        %404 = vmatprep.subr.bf16.mxu0 %v373
        %405 = vmatpush1.bf16.msra.mxu0 %v372
        %406 = vmatprep.subr.bf16.mxu0 %v375
        %407 = vmatpush1.bf16.msra.mxu0 %v374
        %408 = vmatprep.subr.bf16.mxu0 %v377
        %409 = vmatpush1.bf16.msra.mxu0 %v376
        %410 = vmatprep.subr.bf16.mxu0 %v379
        %411 = vmatpush1.bf16.msra.mxu0 %v378
        %412 = vmatprep.subr.bf16.mxu0 %v381
        %413 = vmatpush1.bf16.msra.mxu0 %v380
        %414 = vmatprep.subr.bf16.mxu0 %v383
        %415 = vmatpush1.bf16.msra.mxu0 %v382
        %416 = vmatprep.subr.bf16.mxu0 %v385
        %417 = vmatpush1.bf16.msra.mxu0 %v384
        %418 = vmatprep.subr.bf16.mxu0 0
        %419 = vmatpush1.bf16.msra.mxu0 0
        %420 = vmatprep.subr.bf16.mxu0 0
        %421 = vmatpush1.bf16.msra.mxu0 0
        %422 = vmatprep.subr.bf16.mxu0 0
        %423 = vmatpush1.bf16.msra.mxu0 0
        %424 = vmatprep.subr.bf16.mxu0 0
        %425 = vmatpush1.bf16.msra.mxu0 0
        %426 = vmatprep.subr.bf16.mxu0 0
        %427 = vmatpush1.bf16.msra.mxu0 0
        %428 = vmatprep.subr.bf16.mxu0 0
        %429 = vmatpush1.bf16.msra.mxu0 0
        %430 = vmatprep.subr.bf16.mxu0 0
        %431 = vmatpush1.bf16.msra.mxu0 0
        %432 = vmatprep.subr.bf16.mxu0 0
        %433 = vmatpush1.bf16.msra.mxu0 0
        %434 = vmatprep.mubr.bf16.mxu0 0
        %435 = vmatmul.mubr.bf16.gmra.mrb[0].mxu0 %v284
        %v436 = vpop.f32.mrb[0].mxu0
        %v437 = vadd.f32 %v317, %v436
        %v438 = vpop.f32.mrb[0].mxu0
        %v439 = vadd.f32 %v321, %v438
        %v440 = vpop.f32.mrb[0].mxu0
        %v441 = vpop.f32.mrb[0].mxu0
        %442 = vdwg.mxu0
        %v443 = vxor.u32 %v437, 2147483648
        %v444 = vxor.u32 %v439, 2147483648
        %v445 = vmul.f32 %v443, 1.442695
        %v446 = vpow.pop %v445
        %v447 = vmul.f32 %v444, 1.442695
        %v448 = vpow.pop %v447
        %v449 = vadd.f32 %v446, 1.0
        %v450 = vadd.f32 %v448, 1.0
        %v451 = vrcp.pop %v449
        %v452 = vmul.f32 1.0, %v451
        %v453 = vrcp.pop %v450
        %v454 = vmul.f32 1.0, %v453
        %v455 = vmul.f32 %v437, %v452
        %v456 = vmul.f32 %v439, %v454
        %v457 = vpack.c.bf16 %v455, %v455
        %v458 = vpack.c.bf16 %v456, %v456
        %v459 = vld [vmem:[%s249] sm:$0xf]
        %v460 = vld [vmem:[%s249 + $0x4] sm:$0xf]
        %v461 = vld [vmem:[%s249 + $0x8] sm:$0xf]
        %v462 = vld [vmem:[%s249 + $0xc] sm:$0xf]
        %v463 = vld [vmem:[%s249 + $0x10] sm:$0xf]
        %v464 = vld [vmem:[%s249 + $0x14] sm:$0xf]
        %v465 = vld [vmem:[%s249 + $0x18] sm:$0xf]
        %v466 = vld [vmem:[%s249 + $0x1c] sm:$0xf]
        %v467 = vld [vmem:[%s249 + $0x20] sm:$0xf]
        %v468 = vld [vmem:[%s249 + $0x24] sm:$0xf]
        %v469 = vld [vmem:[%s249 + $0x28] sm:$0xf]
        %v470 = vld [vmem:[%s249 + $0x2c] sm:$0xf]
        %v471 = vld [vmem:[%s249 + $0x30] sm:$0xf]
        %v472 = vld [vmem:[%s249 + $0x34] sm:$0xf]
        %v473 = vld [vmem:[%s249 + $0x38] sm:$0xf]
        %v474 = vld [vmem:[%s249 + $0x3c] sm:$0xf]
        %v475 = vld [vmem:[%s249 + $0x40] sm:$0xf]
        %v476 = vld [vmem:[%s249 + $0x44] sm:$0xf]
        %v477 = vld [vmem:[%s249 + $0x48] sm:$0xf]
        %v478 = vld [vmem:[%s249 + $0x4c] sm:$0xf]
        %v479 = vld [vmem:[%s249 + $0x50] sm:$0xf]
        %v480 = vld [vmem:[%s249 + $0x54] sm:$0xf]
        %v481 = vld [vmem:[%s249 + $0x58] sm:$0xf]
        %v482 = vld [vmem:[%s249 + $0x5c] sm:$0xf]
        %v483 = vld [vmem:[%s249 + $0x60] sm:$0xf]
        %v484 = vld [vmem:[%s249 + $0x64] sm:$0xf]
        %v485 = vld [vmem:[%s249 + $0x68] sm:$0xf]
        %v486 = vld [vmem:[%s249 + $0x6c] sm:$0xf]
        %v487 = vld [vmem:[%s249 + $0x70] sm:$0xf]
        %v488 = vld [vmem:[%s249 + $0x74] sm:$0xf]
        %v489 = vld [vmem:[%s249 + $0x78] sm:$0xf]
        %v490 = vld [vmem:[%s249 + $0x7c] sm:$0xf]
        %v491 = vld [vmem:[%s281] sm:$0x1]
        %v492 = vunpack.c.l.bf16 %v491
        %v493 = vlaneseq
        %v494 = vshrl.u32 %v493, 7
        %v495 = vsub.s32 0, %v494
        %v496 = vrot.slane %v492, %v495
        %v529 = vunpack.c.l.b16 %v459
        %v530 = vunpack.c.l.b16 %v460
        %v531 = vunpack.c.l.b16 %v461
        %v532 = vunpack.c.l.b16 %v462
        %v533 = vunpack.c.l.b16 %v463
        %v534 = vunpack.c.l.b16 %v464
        %v535 = vunpack.c.l.b16 %v465
        %v536 = vunpack.c.l.b16 %v466
        %v537 = vunpack.c.l.b16 %v467
        %v538 = vunpack.c.l.b16 %v468
        %v539 = vunpack.c.l.b16 %v469
        %v540 = vunpack.c.l.b16 %v470
        %v541 = vunpack.c.l.b16 %v471
        %v542 = vunpack.c.l.b16 %v472
        %v543 = vunpack.c.l.b16 %v473
        %v544 = vunpack.c.l.b16 %v474
        %v545 = vunpack.c.l.b16 %v475
        %v546 = vunpack.c.l.b16 %v476
        %v547 = vunpack.c.l.b16 %v477
        %v548 = vunpack.c.l.b16 %v478
        %v549 = vunpack.c.l.b16 %v479
        %v550 = vunpack.c.l.b16 %v480
        %v551 = vunpack.c.l.b16 %v481
        %v552 = vunpack.c.l.b16 %v482
        %v553 = vunpack.c.l.b16 %v483
        %v554 = vunpack.c.l.b16 %v484
        %v555 = vunpack.c.l.b16 %v485
        %v556 = vunpack.c.l.b16 %v486
        %v557 = vunpack.c.l.b16 %v487
        %v558 = vunpack.c.l.b16 %v488
        %v559 = vunpack.c.l.b16 %v489
        %v560 = vunpack.c.l.b16 %v490
        %v561 = vpack.c.b16 %v530, %v529
        %v562 = vpack.c.b16 %v532, %v531
        %v563 = vpack.c.b16 %v534, %v533
        %v564 = vpack.c.b16 %v536, %v535
        %v565 = vpack.c.b16 %v538, %v537
        %v566 = vpack.c.b16 %v540, %v539
        %v567 = vpack.c.b16 %v542, %v541
        %v568 = vpack.c.b16 %v544, %v543
        %v569 = vpack.c.b16 %v546, %v545
        %v570 = vpack.c.b16 %v548, %v547
        %v571 = vpack.c.b16 %v550, %v549
        %v572 = vpack.c.b16 %v552, %v551
        %v573 = vpack.c.b16 %v554, %v553
        %v574 = vpack.c.b16 %v556, %v555
        %v575 = vpack.c.b16 %v558, %v557
        %v576 = vpack.c.b16 %v560, %v559
        %593 = vmatprep.subr.bf16.mxu0 0
        %594 = vmatpush1.bf16.msra.mxu0 %v561
        %595 = vmatprep.subr.bf16.mxu0 0
        %596 = vmatpush1.bf16.msra.mxu0 %v562
        %597 = vmatprep.subr.bf16.mxu0 0
        %598 = vmatpush1.bf16.msra.mxu0 %v563
        %599 = vmatprep.subr.bf16.mxu0 0
        %600 = vmatpush1.bf16.msra.mxu0 %v564
        %601 = vmatprep.subr.bf16.mxu0 0
        %602 = vmatpush1.bf16.msra.mxu0 %v565
        %603 = vmatprep.subr.bf16.mxu0 0
        %604 = vmatpush1.bf16.msra.mxu0 %v566
        %605 = vmatprep.subr.bf16.mxu0 0
        %606 = vmatpush1.bf16.msra.mxu0 %v567
        %607 = vmatprep.subr.bf16.mxu0 0
        %608 = vmatpush1.bf16.msra.mxu0 %v568
        %609 = vmatprep.subr.bf16.mxu0 0
        %610 = vmatpush1.bf16.msra.mxu0 %v569
        %611 = vmatprep.subr.bf16.mxu0 0
        %612 = vmatpush1.bf16.msra.mxu0 %v570
        %613 = vmatprep.subr.bf16.mxu0 0
        %614 = vmatpush1.bf16.msra.mxu0 %v571
        %615 = vmatprep.subr.bf16.mxu0 0
        %616 = vmatpush1.bf16.msra.mxu0 %v572
        %617 = vmatprep.subr.bf16.mxu0 0
        %618 = vmatpush1.bf16.msra.mxu0 %v573
        %619 = vmatprep.subr.bf16.mxu0 0
        %620 = vmatpush1.bf16.msra.mxu0 %v574
        %621 = vmatprep.subr.bf16.mxu0 0
        %622 = vmatpush1.bf16.msra.mxu0 %v575
        %623 = vmatprep.subr.bf16.mxu0 0
        %624 = vmatpush1.bf16.msra.mxu0 %v576
        %625 = vmatprep.mubr.bf16.mxu0 %v458
        %626 = vmatmul.mubr.bf16.gmra.mrb[0].mxu0 %v457
        %v627 = vpop.f32.mrb[0].mxu0
        %v628 = vadd.f32 %v496, %v627
        %v629 = vpop.f32.mrb[0].mxu0
        %v630 = vpop.f32.mrb[0].mxu0
        %v631 = vpop.f32.mrb[0].mxu0
        %632 = vdwg.mxu0
        %633 = vst [vmem:[%s278] sm:$0xff] %v628
        %s634 = sand.u32 %s144, 1
        %s635 = scalar_lea.sflag [#allocation4], %s634
        %s636 = sand.u32 %s144, 1
        %s637 = smul.addr %s636, 8
        %s638 = scalar_lea.vmem [#allocation8], %s637
        // Predicated region
        $region53: #{tpu_custom_call.1} parent=39 // pred_check
          %p639 = pneg %p154
        $region54: #{tpu_custom_call.1} parent=39 // pred_check_branch
          %641 = sbr.rel (%p639) target = $region56
        $region55: #{tpu_custom_call.1} parent=39 // pred_region
          %s643 = ssub.s32 128, 128
          %644 = vsyncadd %s635, %s643
          %s645 = smul.addr %s21, 128
          %s646 = scalar_lea.hbm %s5, %s645
          %s648 = sshll.u32 %s638, 4
          %s649 = int_to_ptr.vmem [resolvable:$true] %s648
          %651 = dma.vmem_to_hbm [thread:$0]  %s649, 128, %s646, %s635
        $region56: #{tpu_custom_call.1} parent=39 // pred_fallthru
          _
      $region40: #{tpu_custom_call.1} parent=5 // pred_fallthru
        _
      %p652 = scmp.le.s32.totalorder 2, %s16
      // Predicated region
      $region57: #{tpu_custom_call.1} parent=5 // pred_check
        %p653 = pneg %p652
      $region58: #{tpu_custom_call.1} parent=5 // pred_check_branch
        %655 = sbr.rel (%p653) target = $region60
      $region59: #{tpu_custom_call.1} parent=5 // pred_region
        %s656 = ssub.s32 %s16, 2
        // Predicated region
        $region61: #{tpu_custom_call.1} parent=59 // pred_check
          %p657 = pneg %p160
        $region62: #{tpu_custom_call.1} parent=59 // pred_check_branch
          %659 = sbr.rel (%p657) target = $region64
        $region63: #{tpu_custom_call.1} parent=59 // pred_region
          %s660 = sand.u32 %s145, 1
          %s661 = scalar_lea.sflag [#allocation4], %s660
          %s662 = sand.u32 %s145, 1
          %s663 = smul.addr %s662, 8
          %s664 = scalar_lea.vmem [#allocation8], %s663
          %665 = dma.done %s661, 128
        $region64: #{tpu_custom_call.1} parent=59 // pred_fallthru
          _
      $region60: #{tpu_custom_call.1} parent=5 // pred_fallthru
        _
    $region6: #{tpu_custom_call.1} parent=1 // loop_footer
      %s20 = sadd.s32 1, %s16
    $region7: #{tpu_custom_call.1} parent=1 // loop_footer_branch
      %15 = sbr.rel target = $region3
    $region8: #{tpu_custom_call.1} parent=1 // loop_exit
      _
    %666 = vsyncpa [#allocation3], 1
    %s667 = scalar_lea.sflag [#allocation3], 1
    %668 = vsyncpa %s667, 1
    %669 = vsyncpa [#allocation6], 1
    %670 = vsyncpa [#allocation4], 1
    %s671 = scalar_lea.sflag [#allocation4], 1
    %672 = vsyncpa %s671, 1

</llo_original>
